<compile_context>
chip_gen: v7x
topology: tpu7x:2x2x1
jax: 0.10.0
libtpu: 0.0.40
codegen_flags: <defaults>
</compile_context>

<pallas_src>
import functools

import jax
import jax.numpy as jnp
from jax import lax
from jax.experimental import pallas as pl
from jax.experimental.pallas import tpu as pltpu


def _round_up(x, m):
    return ((x + m - 1) // m) * m


def _mono_loss_kernel(x_ref, out_ref, acc_ref, *, rows_total, row_tile, length,
                      tiles_per_shard):
    """Per shard: accumulate sum(relu(x[:, :-1] - x[:, 1:])) over its row tiles."""
    s = pl.program_id(0)          # shard (parallel axis)
    t = pl.program_id(1)          # row tile within the shard (reduction axis)

    @pl.when(t == 0)
    def _():
        acc_ref[...] = jnp.zeros_like(acc_ref)

    # Load in native dtype (HBM traffic stays minimal), compute in f32 (VPU has slack).
    x = x_ref[...].astype(jnp.float32)                         # (row_tile, L)

    # Global row offset of this *logical* tile; rows >= rows_total are undefined
    # (ragged last block / clamped overhang tiles) and must be masked.
    row_start = (s * tiles_per_shard + t) * row_tile

    if length % 128 == 0:
        # Lane-dense path: shift via XLU rotate; mask the wrap-around column.
        shifted = pltpu.roll(x, shift=length - 1, axis=1)      # shifted[:, j] = x[:, (j+1) % L]
        relu = jnp.maximum(x - shifted, 0.0)                   # (row_tile, L)
        lane = lax.broadcasted_iota(jnp.int32, relu.shape, 1)
        lane_ok = lane < (length - 1)
    else:
        # General path: (L-1)-wide slice difference (lane-misaligned but correct).
        relu = jnp.maximum(x[:, :-1] - x[:, 1:], 0.0)          # (row_tile, L-1)
        lane_ok = True

    row = lax.broadcasted_iota(jnp.int32, relu.shape, 0)
    valid = jnp.logical_and(lane_ok, (row + row_start) < rows_total)
    masked = jnp.where(valid, relu, 0.0)                       # select -> garbage can't leak

    # Sublane-only reduce per step; accumulator stays lane dense in VMEM.
    acc_ref[...] += jnp.sum(masked, axis=0, keepdims=True)

    @pl.when(t == tiles_per_shard - 1)
    def _():
        # Single cross-lane reduce per shard; broadcast into a lane-dense output block.
        out_ref[...] = jnp.broadcast_to(jnp.sum(acc_ref[...]), out_ref.shape)


def monotonicity_loss(curves, *, max_row_tile=1024,
                      vmem_budget_bytes=8 * 1024 * 1024, num_shards=2):
    """Pallas implementation of MonotonicityLoss.forward: relu(diff).mean()."""
    L = curves.shape[-1]
    if L < 2 or curves.size == 0:
        # torch mean over an empty tensor -> nan.
        return jnp.asarray(jnp.nan, dtype=curves.dtype)

    x2d = curves.reshape(-1, L)                                # (R, L)
    R = x2d.shape[0]
    itemsize = jnp.dtype(curves.dtype).itemsize

    # Minimum sublane granularity for this dtype's BlockSpec (f32:8, bf16:16, 8-bit:32).
    sub = {4: 8, 2: 16, 1: 32}.get(itemsize, 8)

    # Largest row tile whose double-buffered input block fits the (conservative) VMEM
    # budget — safe under the default scoped limits on all generations.
    fit_rows = max(sub, vmem_budget_bytes // max(1, 2 * L * itemsize))
    row_tile = min(max_row_tile, fit_rows, _round_up(R, sub))
    row_tile = max(sub, (row_tile // sub) * sub)

    num_tiles = pl.cdiv(R, row_tile)
    # Shard row tiles across TensorCores (2 on v7x; sequential & harmless on v5e/v6e).
    S = num_shards if num_tiles >= num_shards else 1
    tiles_per_shard = pl.cdiv(num_tiles, S)

    acc_cols = L if L % 128 == 0 else L - 1

    kernel = functools.partial(
        _mono_loss_kernel, rows_total=R, row_tile=row_tile, length=L,
        tiles_per_shard=tiles_per_shard)

    def in_map(s, t):
        # Clamp overhang tiles of the last shard onto the last real tile; their
        # contribution is masked in-kernel via the (unclamped) global row offset.
        return (jnp.minimum(s * tiles_per_shard + t, num_tiles - 1), 0)

    partials = pl.pallas_call(
        kernel,
        out_shape=jax.ShapeDtypeStruct((S, 8, 128), jnp.float32),
        grid_spec=pltpu.PrefetchScalarGridSpec(
            num_scalar_prefetch=0,
            grid=(S, tiles_per_shard),
            in_specs=[pl.BlockSpec((row_tile, L), in_map)],
            out_specs=pl.BlockSpec((1, 8, 128), lambda s, t: (s, 0, 0)),
            scratch_shapes=[pltpu.VMEM((1, acc_cols), jnp.float32)],
        ),
        compiler_params=pltpu.CompilerParams(
            dimension_semantics=("parallel", "arbitrary"),
        ),
    )(x2d)

    denom = jnp.float32(R * (L - 1))
    loss = jnp.sum(partials[:, 0, 0]) / denom
    return loss.astype(curves.dtype)


def monotonicity_loss_ref(curves):
    """Pure-jnp reference (same math: f32 diff/relu, mean over R*(L-1) entries)."""
    d = curves[..., :-1].astype(jnp.float32) - curves[..., 1:].astype(jnp.float32)
    return (jnp.sum(jnp.maximum(d, 0.0)) / jnp.float32(d.size)).astype(curves.dtype)


if __name__ == "__main__":
    key = jax.random.PRNGKey(0)
    k1, k2, k3, k4 = jax.random.split(key, 4)

    tests = [
        # (batch=2, num_curves=4, points=128): single aligned tile, roll path.
        (jax.random.normal(k1, (2, 4, 128), dtype=jnp.float32), {}),
        # Ragged rows (R=15) with aligned lanes: exercises in-kernel row masking.
        (jax.random.normal(k2, (3, 5, 256), dtype=jnp.float32), {}),
        # Non-128-multiple curve length: exercises the slice fallback path.
        (jax.random.normal(k3, (2, 7, 96), dtype=jnp.float32), {}),
        # Many rows + small forced tile: multi-tile accumulation, 2-way TensorCore
        # shard split, and a masked overhang tile (80 rows -> 3 tiles over 2 shards).
        (jax.random.normal(k4, (5, 16, 128), dtype=jnp.float32), {"max_row_tile": 32}),
        # bf16 input: 16-row sublane granularity, bf16 HBM traffic, f32 accumulation.
        (jax.random.normal(k1, (4, 4, 128), dtype=jnp.float32).astype(jnp.bfloat16), {}),
    ]

    for x, kwargs in tests:
        loss = jax.block_until_ready(monotonicity_loss(x, **kwargs))
        ref = jax.block_until_ready(monotonicity_loss_ref(x))
        if x.dtype == jnp.bfloat16:
            tol = dict(rtol=2e-2, atol=1e-3)
        else:
            tol = dict(rtol=1e-5, atol=1e-6)
        assert jnp.allclose(loss.astype(jnp.float32), ref.astype(jnp.float32), **tol), (
            x.shape, x.dtype, loss, ref)

    print("KERNEL_OK")
</pallas_src>

<mosaic_0001>
module attributes {stable_mosaic.version = 11 : i64} {
  func.func @_mono_loss_kernel(%arg0: i32, %arg1: i32, %arg2: memref<8x128xf32, #tpu.memory_space<vmem>>, %arg3: memref<1x8x128xf32, #tpu.memory_space<vmem>>, %arg4: memref<1x128xf32, #tpu.memory_space<vmem>>) attributes {dimension_semantics = [#tpu.dimension_semantics<parallel>, #tpu.dimension_semantics<arbitrary>], iteration_bounds = array<i64: 1, 1>, scalar_prefetch = 0 : i64, scratch_operands = 1 : i64, tpu.core_type = #tpu.core_type<tc>, window_params = [{transform_indices = @transform_0, window_bounds = array<i64: 8, 128>}, {transform_indices = @transform_1, window_bounds = array<i64: 1, 8, 128>}]} {
    %c0_i32 = arith.constant 0 : i32
    %0 = arith.cmpi eq, %arg1, %c0_i32 : i32
    %1 = arith.extui %0 : i1 to i32
    %c0_i32_0 = arith.constant 0 : i32
    %2 = arith.cmpi ne, %1, %c0_i32_0 : i32
    scf.if %2 {
      %cst_12 = arith.constant 0.000000e+00 : f32
      %30 = vector.broadcast %cst_12 : f32 to vector<1x128xf32>
      %c0_13 = arith.constant 0 : index
      %c0_14 = arith.constant 0 : index
      %31 = vector.load %arg4[%c0_13, %c0_14] : memref<1x128xf32, #tpu.memory_space<vmem>>, vector<1x128xf32>
      tpu.vector_store %arg4[%c0_13, %c0_14], %30 {strides = array<i32>} : memref<1x128xf32, #tpu.memory_space<vmem>>, vector<1x128xf32>,
    } else {
    }
    %c0 = arith.constant 0 : index
    %c0_1 = arith.constant 0 : index
    %3 = vector.load %arg2[%c0, %c0_1] : memref<8x128xf32, #tpu.memory_space<vmem>>, vector<8x128xf32>
    %c1_i32 = arith.constant 1 : i32
    %4 = arith.muli %arg0, %c1_i32 : i32
    %5 = arith.addi %4, %arg1 : i32
    %c8_i32 = arith.constant 8 : i32
    %6 = arith.muli %5, %c8_i32 : i32
    %c127_i32 = arith.constant 127 : i32
    %7 = tpu.dynamic_rotate %3 by %c127_i32 dim 1 : vector<8x128xf32>, i32 -> vector<8x128xf32>
    %8 = arith.subf %3, %7 : vector<8x128xf32>
    %cst = arith.constant 0.000000e+00 : f32
    %9 = vector.broadcast %cst : f32 to vector<8x128xf32>
    %10 = arith.maximumf %8, %9 : vector<8x128xf32>
    %11 = tpu.iota {dimensions = array<i32: 1>} : vector<8x128xi32>
    %c127_i32_2 = arith.constant 127 : i32
    %12 = vector.broadcast %c127_i32_2 : i32 to vector<8x128xi32>
    %13 = arith.cmpi slt, %11, %12 : vector<8x128xi32>
    %14 = tpu.iota {dimensions = array<i32: 0>} : vector<8x128xi32>
    %15 = vector.broadcast %6 : i32 to vector<8x128xi32>
    %16 = arith.addi %14, %15 : vector<8x128xi32>
    %c8_i32_3 = arith.constant 8 : i32
    %17 = vector.broadcast %c8_i32_3 : i32 to vector<8x128xi32>
    %18 = arith.cmpi slt, %16, %17 : vector<8x128xi32>
    %19 = arith.andi %13, %18 : vector<8x128xi1>
    %cst_4 = arith.constant 0.000000e+00 : f32
    %20 = vector.broadcast %cst_4 : f32 to vector<8x128xf32>
    %21 = arith.select %19, %10, %20 : vector<8x128xi1>, vector<8x128xf32>
    %c0_5 = arith.constant 0 : index
    %c0_6 = arith.constant 0 : index
    %22 = vector.load %arg4[%c0_5, %c0_6] : memref<1x128xf32, #tpu.memory_space<vmem>>, vector<1x128xf32>
    %cst_7 = arith.constant dense<0.000000e+00> : vector<128xf32>
    %23 = vector.multi_reduction <add>, %21, %cst_7 [0] : vector<8x128xf32> to vector<128xf32>
    %24 = vector.shape_cast %23 : vector<128xf32> to vector<1x128xf32>
    %25 = arith.addf %22, %24 : vector<1x128xf32>
    %c0_8 = arith.constant 0 : index
    %c0_9 = arith.constant 0 : index
    %26 = vector.load %arg4[%c0_8, %c0_9] : memref<1x128xf32, #tpu.memory_space<vmem>>, vector<1x128xf32>
    tpu.vector_store %arg4[%c0_8, %c0_9], %25 {strides = array<i32>} : memref<1x128xf32, #tpu.memory_space<vmem>>, vector<1x128xf32>,
    %c0_i32_10 = arith.constant 0 : i32
    %27 = arith.cmpi eq, %arg1, %c0_i32_10 : i32
    %28 = arith.extui %27 : i1 to i32
    %c0_i32_11 = arith.constant 0 : i32
    %29 = arith.cmpi ne, %28, %c0_i32_11 : i32
    scf.if %29 {
      %c0_12 = arith.constant 0 : index
      %c0_13 = arith.constant 0 : index
      %30 = vector.load %arg4[%c0_12, %c0_13] : memref<1x128xf32, #tpu.memory_space<vmem>>, vector<1x128xf32>
      %31 = vector.shape_cast %30 : vector<1x128xf32> to vector<1x1x128xf32>
      %cst_14 = arith.constant dense<0.000000e+00> : vector<1xf32>
      %32 = vector.multi_reduction <add>, %31, %cst_14 [1, 2] : vector<1x1x128xf32> to vector<1xf32>
      %33 = vector.shape_cast %32 : vector<1xf32> to vector<1x1x1xf32>
      %34 = vector.extract %33[0, 0, 0] : f32 from vector<1x1x1xf32>
      %35 = vector.broadcast %34 : f32 to vector<1x8x128xf32>
      %c0_15 = arith.constant 0 : index
      %c0_16 = arith.constant 0 : index
      %c0_17 = arith.constant 0 : index
      %36 = vector.load %arg3[%c0_15, %c0_16, %c0_17] : memref<1x8x128xf32, #tpu.memory_space<vmem>>, vector<1x8x128xf32>
      tpu.vector_store %arg3[%c0_15, %c0_16, %c0_17], %35 {strides = array<i32>} : memref<1x8x128xf32, #tpu.memory_space<vmem>>, vector<1x8x128xf32>,
    } else {
    }
    return
  }
  func.func @transform_0(%arg0: i32, %arg1: i32) -> (i32, i32) {
    %c1_i32 = arith.constant 1 : i32
    %0 = arith.muli %arg0, %c1_i32 : i32
    %1 = arith.addi %0, %arg1 : i32
    %c0_i32 = arith.constant 0 : i32
    %2 = arith.minsi %1, %c0_i32 : i32
    %c0_i32_0 = arith.constant 0 : i32
    %c0_i32_1 = arith.constant 0 : i32
    return %2, %c0_i32_0 : i32, i32
  }
  func.func @transform_1(%arg0: i32, %arg1: i32) -> (i32, i32, i32) {
    %c0_i32 = arith.constant 0 : i32
    %c0_i32_0 = arith.constant 0 : i32
    %c0_i32_1 = arith.constant 0 : i32
    return %arg0, %c0_i32, %c0_i32_0 : i32, i32, i32
  }
}

</mosaic_0001>

<llo_original>
// kernel: tpu_custom_call.1
$region0: #{tpu_custom_call.1}
  #allocation0 [shape = 'u32[]', space=smem, size = 0x4, offset = 0x4, fixed_abs, tag = 'smem constant byte address 0x4 - core index']
  #allocation1 [shape = 'u32[144,128]{1,0:T(1,128)}', space=vmem, size = 0x12000, scoped, tag = 'internal scratch']
  #allocation2 [shape = 'f32[1,128]{1,0:T(1,128)}', space=vmem, size = 0x200, scoped, tag = 'scratch operand']
  %s0 = inlined_call_operand.hbm [shape: f32[8,128], index: 0, kind: input, shape index: {}]
  %s1 = inlined_call_operand.hbm [shape: f32[1,8,128], index: 1, kind: output, shape index: {}]
  %s2 = sld [smem:[#allocation0]]
  $region26: #{tpu_custom_call.1} parent=0
    _
  %s4 = ssub.s32 1, %s2
  %s5 = scalar_select 0, %s4, %s2
  $region1: #{tpu_custom_call.1} parent=0
    #allocation3 [shape = 'u8[4096]{0}', space=vmem, size = 0x1000, scoped, tag = 'input window, operand 0, single buffered']
    #allocation4 [shape = 's32[1]{0}', space=sflag, size = 0x4, scoped, tag = 'scoped memory for tpu_custom_call.1']
    #allocation5 [shape = 's32[1]{0}', space=sflag, size = 0x4, scoped, tag = 'scoped memory for tpu_custom_call.1']
    #allocation6 [shape = 'u8[4096]{0}', space=vmem, size = 0x1000, scoped, tag = 'output window, operand 0, single buffered']
    %6 = vsyncpa [#allocation4], 0
    %7 = vsyncpa [#allocation5], 0
    // Predicated region
    $region2: #{tpu_custom_call.1} parent=1 // pred_check
      _
    $region3: #{tpu_custom_call.1} parent=1 // pred_check_branch
      %9 = sbr.rel (0) target = $region5
    $region4: #{tpu_custom_call.1} parent=1 // pred_region
      %s10 = sadd.s32 0, 0
      %p11 = scmp.lt.s32.totalorder %s10, 0
      %s12 = scalar_select %p11, %s10, 0
      %s14 = ssub.s32 128, 128
      %15 = vsyncadd [#allocation4], %s14
      %s16 = smul.addr %s12, 128
      %s17 = scalar_lea.hbm %s0, %s16
      %s19 = sshll.u32 [#allocation3], 4
      %s20 = int_to_ptr.vmem [resolvable:$true] %s19
      %22 = dma.hbm_to_vmem [thread:$0]  %s17, 128, %s20, [#allocation4]
    $region5: #{tpu_custom_call.1} parent=1 // pred_fallthru
      _
    // Predicated region
    $region6: #{tpu_custom_call.1} parent=1 // pred_check
      _
    $region7: #{tpu_custom_call.1} parent=1 // pred_check_branch
      %24 = sbr.rel (0) target = $region9
    $region8: #{tpu_custom_call.1} parent=1 // pred_region
      %25 = dma.done [#allocation4], 128
    $region9: #{tpu_custom_call.1} parent=1 // pred_fallthru
      _
    %s26 = sadd.s32 0, 0
    %p27 = scmp.lt.s32.totalorder %s26, 0
    %s28 = scalar_select %p27, %s26, 0
    %p29 = scmp.eq.s32.totalorder 0, 0
    // Predicated region
    $region10: #{tpu_custom_call.1} parent=1 // pred_check
      %p30 = pneg %p29
    $region11: #{tpu_custom_call.1} parent=1 // pred_check_branch
      %32 = sbr.rel (%p30) target = $region13
    $region12: #{tpu_custom_call.1} parent=1 // pred_region
      %33 = vst [vmem:[#allocation2] sm:$0x1] 0.0
    $region13: #{tpu_custom_call.1} parent=1 // pred_fallthru
      _
    %v34 = vld [vmem:[#allocation3] sm:$0xff]
    %s35 = sadd.s32 0, 0
    %s36 = smul.u32 %s35, 8
    %37 = vrot.lane.b32.xlu0 %v34, 127
    %v38 = vpop.permute.xlu0 %37
    %v39 = vsub.f32 %v34, %v38
    %v40 = vmax.f32 %v39, 0.0
    %v41 = vlaneseq
    %v42 = vand.u32 %v41, 127
    %vm43 = vcmp.lt.s32.totalorder %v42, 127
    %v44 = vlaneseq
    %v45 = vshrl.u32 %v44, 7
    %v46 = vstv %s36
    %v47 = vadd.s32 %v45, %v46
    %vm48 = vcmp.lt.s32.totalorder %v47, 8
    %vm49 = vmand %vm43, %vm48
    %v50 = vsel %vm49, %v40, 0.0
    %v51 = vld [vmem:[#allocation2] sm:$0x1]
    %v52 = vrot.slane %v50, 4
    %v53 = vadd.f32 %v50, %v52
    %v54 = vrot.slane %v53, 2
    %v55 = vadd.f32 %v53, %v54
    %v56 = vrot.slane %v55, 1
    %v57 = vadd.f32 %v55, %v56
    %v58 = vadd.f32 %v51, %v57
    %59 = vst [vmem:[#allocation2] sm:$0x1] %v58
    // Predicated region
    $region14: #{tpu_custom_call.1} parent=1 // pred_check
      %p60 = pneg %p29
    $region15: #{tpu_custom_call.1} parent=1 // pred_check_branch
      %62 = sbr.rel (%p60) target = $region17
    $region16: #{tpu_custom_call.1} parent=1 // pred_region
      %v63 = vld [vmem:[#allocation2] sm:$0x1]
      %vm64 = vcmask 1040384
      %v65 = vsel %vm64, %v63, 0.0
      %66 = vadd.xlane.f32.xlu0 %v65
      %v67 = vpop.xlane.xlu0 %66
      %v68 = vrot.slane %v67, 4
      %v69 = vadd.f32 %v67, %v68
      %v70 = vrot.slane %v69, 2
      %v71 = vadd.f32 %v69, %v70
      %v72 = vrot.slane %v71, 1
      %v73 = vadd.f32 %v71, %v72
      %s74 = vtos %v73
      %v75 = vstv %s74
      %76 = vst [vmem:[#allocation6] sm:$0xff] %v75
    $region17: #{tpu_custom_call.1} parent=1 // pred_fallthru
      _
    // Predicated region
    $region18: #{tpu_custom_call.1} parent=1 // pred_check
      _
    $region19: #{tpu_custom_call.1} parent=1 // pred_check_branch
      %78 = sbr.rel (0) target = $region21
    $region20: #{tpu_custom_call.1} parent=1 // pred_region
      %s80 = ssub.s32 128, 128
      %81 = vsyncadd [#allocation5], %s80
      %s83 = sshll.u32 [#allocation6], 4
      %s84 = int_to_ptr.vmem [resolvable:$true] %s83
      %86 = dma.vmem_to_hbm [thread:$0]  %s84, 128, %s1, [#allocation5]
    $region21: #{tpu_custom_call.1} parent=1 // pred_fallthru
      _
    // Predicated region
    $region22: #{tpu_custom_call.1} parent=1 // pred_check
      _
    $region23: #{tpu_custom_call.1} parent=1 // pred_check_branch
      %88 = sbr.rel (0) target = $region25
    $region24: #{tpu_custom_call.1} parent=1 // pred_region
      %89 = dma.done [#allocation5], 128
    $region25: #{tpu_custom_call.1} parent=1 // pred_fallthru
      _
    %90 = vsyncpa [#allocation4], 1
    %91 = vsyncpa [#allocation5], 1

</llo_original>
